<compile_context>
chip_gen: v6e
topology: v6e:2x2x1
jax: 0.10.0
libtpu: 0.0.40
codegen_flags: <defaults>
</compile_context>

<pallas_src>
import jax
import jax.numpy as jnp
from jax.experimental import pallas as pl
from jax.experimental.pallas import tpu as pltpu


def _convnet_kernel(x_ref, p_ref, out_ref):
    n, d_in = x_ref.shape
    h = p_ref.shape[1]                 # hidden size
    hpad = (h + 7) // 8 * 8            # 8-sublane-aligned row offset for the A block

    x = x_ref[...]

    # ---- unpack the single parameter buffer (static slices = cheap views) ----
    b_in = p_ref[0:1, :]                             # (1, H)
    b2 = p_ref[1:2, :]                               # (1, H)
    c = p_ref[2:3, 0:1]                              # (1, 1) fused tail constant
    w_in = p_ref[3:3 + d_in, :]                      # (D, H)
    w2 = p_ref[8:8 + h, :]                           # (H, H)
    a_mat = p_ref[8 + hpad:8 + hpad + h, 0:3]        # (H, 3) fused conv1/conv_out/fc_out taps

    # ---- fc_in + tanh: tiny MXU dot (K = input_dim) ----
    h1 = jnp.tanh(jnp.dot(x, w_in, preferred_element_type=jnp.float32) + b_in)

    # ---- fc2 + tanh ----
    h2 = jnp.tanh(jnp.dot(h1, w2, preferred_element_type=jnp.float32) + b2)
    # Dropout(p=0.2): identity in eval/inference mode.
    # TODO(synk): training-mode dropout (pltpu.prng_* masking) not implemented.

    # ---- fused conv1(k=3,pad=1) o conv_out(k=1) o fc_out: one (N,H)@(H,3) dot ----
    t = jnp.dot(h2, a_mat, preferred_element_type=jnp.float32)   # (N, 3)

    # padding=1 behaviour: shift tap-0 column down one row, tap-2 column up one row,
    # zeroing the wrapped border rows (valid only while the batch is one block).
    t_down = pltpu.roll(t, 1, axis=0)        # t_down[l] = t[l-1]
    t_up = pltpu.roll(t, n - 1, axis=0)      # t_up[l]   = t[l+1]
    row = jax.lax.broadcasted_iota(jnp.int32, (n, 1), 0)

    u = (t[:, 1:2]
         + jnp.where(row == 0, 0.0, t_down[:, 0:1])
         + jnp.where(row == n - 1, 0.0, t_up[:, 2:3])
         + c)

    # TODO(synk): for large N, write a lane-dense (N/128, 128) slab instead of (N, 1).
    out_ref[...] = u


def conv_network_forward(x, params):
    """x: (N, input_dim) float32. Returns u_theta: (N, 1) float32."""
    n = x.shape[0]
    vmem = pl.BlockSpec(memory_space=pltpu.MemorySpace.VMEM)
    return pl.pallas_call(
        _convnet_kernel,
        out_shape=jax.ShapeDtypeStruct((n, 1), jnp.float32),
        in_specs=[vmem, vmem],
        out_specs=vmem,
    )(x, params)


def init_params(key, hidden_size=20, input_dim=2):
    """Deterministic init mirroring the PyTorch module (xavier_uniform weights,
    PyTorch-default uniform biases). Returns (params, raw_params):
      params:     single packed/fused parameter buffer consumed by the Pallas kernel.
      raw_params: unfused tensors used by the pure-JAX reference."""
    H, D = hidden_size, input_dim
    assert D <= 5, "param packing reserves rows 3..7 for fc_in weight rows"
    ks = jax.random.split(key, 10)

    def xavier(k, shape, fan_in, fan_out):
        bound = float(jnp.sqrt(6.0 / (fan_in + fan_out)))
        return jax.random.uniform(k, shape, jnp.float32, -bound, bound)

    def bias(k, shape, fan_in):
        bound = 1.0 / float(jnp.sqrt(float(fan_in)))
        return jax.random.uniform(k, shape, jnp.float32, -bound, bound)

    # fc_in: Linear(D -> H)         (weights stored transposed: (in, out))
    w_in = xavier(ks[0], (D, H), D, H)
    b_in = bias(ks[1], (1, H), D)
    # fc2: Linear(H -> H)
    w2 = xavier(ks[2], (H, H), H, H)
    b2 = bias(ks[3], (1, H), H)
    # conv1: Conv1d(H -> 2H, k=3, pad=1); PyTorch weight shape (2H, H, 3)
    w1 = xavier(ks[4], (2 * H, H, 3), H * 3, 2 * H * 3)
    b_c1 = bias(ks[5], (1, 2 * H), H * 3)
    # conv_out: Conv1d(2H -> 2, k=1); PyTorch weight shape (2, 2H, 1)
    w_co = jnp.transpose(xavier(ks[6], (2, 2 * H, 1), 2 * H, 2)[:, :, 0])   # (2H, 2)
    b_co = bias(ks[7], (1, 2), 2 * H)
    # fc_out: Linear(2 -> 1)
    w_fo = jnp.transpose(xavier(ks[8], (1, 2), 2, 1))                       # (2, 1)
    b_fo = bias(ks[9], (1, 1), 2)

    raw = dict(w_in=w_in, b_in=b_in, w2=w2, b2=b2, w1=w1, b_c1=b_c1,
               w_co=w_co, b_co=b_co, w_fo=w_fo, b_fo=b_fo)

    # ---- host-side exact fusion of conv1 -> conv_out -> fc_out ----
    w_tail = jnp.dot(w_co, w_fo)                                  # (2H, 1)
    a_mat = jnp.concatenate(
        [jnp.dot(jnp.transpose(w1[:, :, k]), w_tail) for k in range(3)],
        axis=1)                                                   # (H, 3)
    c = jnp.dot(b_c1, w_tail) + jnp.dot(b_co, w_fo) + b_fo        # (1, 1)

    # ---- single packed parameter buffer (one DMA) ----
    # rows 0..7           : b_in, b2, c-scalar, fc_in weight rows
    # rows 8..8+H-1       : w2
    # rows 8+Hpad..+H-1   : fused tap matrix A (8-sublane-aligned start)
    hpad = (H + 7) // 8 * 8
    rows = 8 + hpad + H
    params = jnp.zeros((rows, H), jnp.float32)
    params = params.at[0, :].set(b_in[0])
    params = params.at[1, :].set(b2[0])
    params = params.at[2, 0].set(c[0, 0])
    params = params.at[3:3 + D, :].set(w_in)
    params = params.at[8:8 + H, :].set(w2)
    params = params.at[8 + hpad:8 + hpad + H, 0:3].set(a_mat)

    return params, raw


def reference_forward(x, p):
    """Pure-JAX replica of the PyTorch forward (unfused), for correctness check."""
    h1 = jnp.tanh(x @ p["w_in"] + p["b_in"])
    h2 = jnp.tanh(h1 @ p["w2"] + p["b2"])
    zeros_row = jnp.zeros((1, h2.shape[1]), h2.dtype)
    h2_prev = jnp.concatenate([zeros_row, h2[:-1]], axis=0)
    h2_next = jnp.concatenate([h2[1:], zeros_row], axis=0)
    w1 = p["w1"]  # (2H, H, 3)
    c1 = (h2_prev @ w1[:, :, 0].T + h2 @ w1[:, :, 1].T + h2_next @ w1[:, :, 2].T
          + p["b_c1"])
    c2 = c1 @ p["w_co"] + p["b_co"]
    return c2 @ p["w_fo"] + p["b_fo"]


if __name__ == "__main__":
    key = jax.random.PRNGKey(0)
    k_x, k_p = jax.random.split(key)

    N, INPUT_DIM, HIDDEN = 64, 2, 20  # module defaults: input_dim=2, hidden_size=20
    x = jax.random.normal(k_x, (N, INPUT_DIM), jnp.float32)
    params, raw_params = init_params(k_p, hidden_size=HIDDEN, input_dim=INPUT_DIM)

    u_theta = conv_network_forward(x, params)
    jax.block_until_ready(u_theta)
    assert u_theta.shape == (N, 1) and u_theta.dtype == jnp.float32

    u_ref = reference_forward(x, raw_params)
    max_err = float(jnp.max(jnp.abs(u_theta - u_ref)))
    # All fusions are exact f32 reassociations -> tight tolerance.
    assert max_err < 1e-4, f"mismatch vs reference: max abs err = {max_err}"

    print("KERNEL_OK")
</pallas_src>

<mosaic_0001>
module attributes {stable_mosaic.version = 11 : i64} {
  func.func @_convnet_kernel(%arg0: memref<64x2xf32, #tpu.memory_space<vmem>>, %arg1: memref<52x20xf32, #tpu.memory_space<vmem>>, %arg2: memref<64x1xf32, #tpu.memory_space<vmem>>) attributes {dimension_semantics = [], scalar_prefetch = 0 : i64, scratch_operands = 0 : i64, tpu.core_type = #tpu.core_type<tc>} {
    %c0 = arith.constant 0 : index
    %c0_0 = arith.constant 0 : index
    %0 = vector.load %arg0[%c0, %c0_0] : memref<64x2xf32, #tpu.memory_space<vmem>>, vector<64x2xf32>
    %c0_1 = arith.constant 0 : index
    %c0_2 = arith.constant 0 : index
    %1 = vector.load %arg1[%c0_1, %c0_2] : memref<52x20xf32, #tpu.memory_space<vmem>>, vector<1x20xf32>
    %c1 = arith.constant 1 : index
    %c0_3 = arith.constant 0 : index
    %2 = vector.load %arg1[%c1, %c0_3] : memref<52x20xf32, #tpu.memory_space<vmem>>, vector<1x20xf32>
    %c2 = arith.constant 2 : index
    %c0_4 = arith.constant 0 : index
    %3 = vector.load %arg1[%c2, %c0_4] : memref<52x20xf32, #tpu.memory_space<vmem>>, vector<1x1xf32>
    %c3 = arith.constant 3 : index
    %c0_5 = arith.constant 0 : index
    %4 = vector.load %arg1[%c3, %c0_5] : memref<52x20xf32, #tpu.memory_space<vmem>>, vector<2x20xf32>
    %c8 = arith.constant 8 : index
    %c0_6 = arith.constant 0 : index
    %5 = vector.load %arg1[%c8, %c0_6] : memref<52x20xf32, #tpu.memory_space<vmem>>, vector<20x20xf32>
    %c32 = arith.constant 32 : index
    %c0_7 = arith.constant 0 : index
    %6 = vector.load %arg1[%c32, %c0_7] : memref<52x20xf32, #tpu.memory_space<vmem>>, vector<20x3xf32>
    %cst = arith.constant dense<0.000000e+00> : vector<64x20xf32>
    %7 = tpu.matmul %0, %4, %cst {dimension_numbers = #tpu.dot_dimension_numbers<[1], [0], [0], [1], [0, 0, 1, 1], [], []>} : vector<64x2xf32>, vector<2x20xf32>, vector<64x20xf32> -> vector<64x20xf32>
    %8 = vector.broadcast %1 : vector<1x20xf32> to vector<64x20xf32>
    %9 = arith.addf %7, %8 : vector<64x20xf32>
    %10 = math.tanh %9 : vector<64x20xf32>
    %cst_8 = arith.constant dense<0.000000e+00> : vector<64x20xf32>
    %11 = tpu.matmul %10, %5, %cst_8 {dimension_numbers = #tpu.dot_dimension_numbers<[1], [0], [0], [1], [0, 0, 1, 1], [], []>} : vector<64x20xf32>, vector<20x20xf32>, vector<64x20xf32> -> vector<64x20xf32>
    %12 = vector.broadcast %2 : vector<1x20xf32> to vector<64x20xf32>
    %13 = arith.addf %11, %12 : vector<64x20xf32>
    %14 = math.tanh %13 : vector<64x20xf32>
    %cst_9 = arith.constant dense<0.000000e+00> : vector<64x3xf32>
    %15 = tpu.matmul %14, %6, %cst_9 {dimension_numbers = #tpu.dot_dimension_numbers<[1], [0], [0], [1], [0, 0, 1, 1], [], []>} : vector<64x20xf32>, vector<20x3xf32>, vector<64x3xf32> -> vector<64x3xf32>
    %c1_i32 = arith.constant 1 : i32
    %16 = tpu.dynamic_rotate %15 by %c1_i32 dim 0 : vector<64x3xf32>, i32 -> vector<64x3xf32>
    %c63_i32 = arith.constant 63 : i32
    %17 = tpu.dynamic_rotate %15 by %c63_i32 dim 0 : vector<64x3xf32>, i32 -> vector<64x3xf32>
    %18 = tpu.iota {dimensions = array<i32: 0>} : vector<64x1xi32>
    %19 = vector.extract_strided_slice %15 {offsets = [0, 1], sizes = [64, 1], strides = [1, 1]} : vector<64x3xf32> to vector<64x1xf32>
    %c0_i32 = arith.constant 0 : i32
    %20 = vector.broadcast %c0_i32 : i32 to vector<64x1xi32>
    %21 = arith.cmpi eq, %18, %20 : vector<64x1xi32>
    %22 = vector.extract_strided_slice %16 {offsets = [0, 0], sizes = [64, 1], strides = [1, 1]} : vector<64x3xf32> to vector<64x1xf32>
    %cst_10 = arith.constant 0.000000e+00 : f32
    %23 = vector.broadcast %cst_10 : f32 to vector<64x1xf32>
    %24 = arith.select %21, %23, %22 : vector<64x1xi1>, vector<64x1xf32>
    %25 = arith.addf %19, %24 : vector<64x1xf32>
    %c63_i32_11 = arith.constant 63 : i32
    %26 = vector.broadcast %c63_i32_11 : i32 to vector<64x1xi32>
    %27 = arith.cmpi eq, %18, %26 : vector<64x1xi32>
    %28 = vector.extract_strided_slice %17 {offsets = [0, 2], sizes = [64, 1], strides = [1, 1]} : vector<64x3xf32> to vector<64x1xf32>
    %cst_12 = arith.constant 0.000000e+00 : f32
    %29 = vector.broadcast %cst_12 : f32 to vector<64x1xf32>
    %30 = arith.select %27, %29, %28 : vector<64x1xi1>, vector<64x1xf32>
    %31 = arith.addf %25, %30 : vector<64x1xf32>
    %32 = vector.broadcast %3 : vector<1x1xf32> to vector<64x1xf32>
    %33 = arith.addf %31, %32 : vector<64x1xf32>
    %c0_13 = arith.constant 0 : index
    %c0_14 = arith.constant 0 : index
    %34 = vector.load %arg2[%c0_13, %c0_14] : memref<64x1xf32, #tpu.memory_space<vmem>>, vector<64x1xf32>
    tpu.vector_store %arg2[%c0_13, %c0_14], %33 {strides = array<i32>} : memref<64x1xf32, #tpu.memory_space<vmem>>, vector<64x1xf32>,
    return
  }
}

</mosaic_0001>

<llo_original>
// kernel: tpu_custom_call.1
$region0: #{tpu_custom_call.1}
  #allocation0 [shape = 'u32[]', space=smem, size = 0x4, offset = 0x4, fixed_abs, tag = 'smem constant byte address 0x4 - core index']
  #allocation1 [shape = 'u32[144,128]{1,0:T(1,128)}', space=vmem, size = 0x12000, scoped, tag = 'internal scratch']
  %s0 = inlined_call_operand.vmem [shape: f32[64,2], index: 0, kind: input, shape index: {}]
  %s1 = inlined_call_operand.vmem [shape: f32[52,20], index: 1, kind: input, shape index: {}]
  %s2 = inlined_call_operand.vmem [shape: f32[64,1], index: 2, kind: output, shape index: {}]
  %s3 = sld [smem:[#allocation0]]
  $region18: #{tpu_custom_call.1} parent=0
    _
  %s5 = ssub.s32 1, %s3
  %s6 = scalar_select 0, %s5, %s3
  // Predicated region
  $region2: #{tpu_custom_call.1} parent=0 // pred_check
    _
  $region3: #{tpu_custom_call.1} parent=0 // pred_check_branch
    %8 = sbr.rel (0) target = $region5
  $region4: #{tpu_custom_call.1} parent=0 // pred_region
    _
  $region5: #{tpu_custom_call.1} parent=0 // pred_fallthru
    _
  // Predicated region
  $region6: #{tpu_custom_call.1} parent=0 // pred_check
    _
  $region7: #{tpu_custom_call.1} parent=0 // pred_check_branch
    %10 = sbr.rel (0) target = $region9
  $region8: #{tpu_custom_call.1} parent=0 // pred_region
    _
  $region9: #{tpu_custom_call.1} parent=0 // pred_fallthru
    _
  %v11 = vld [vmem:[%s0] sm:$0xff]
  %v12 = vld [vmem:[%s0 + $0x8] sm:$0xff]
  %v13 = vld [vmem:[%s0 + $0x10] sm:$0xff]
  %v14 = vld [vmem:[%s0 + $0x18] sm:$0xff]
  %v15 = vld [vmem:[%s0 + $0x20] sm:$0xff]
  %v16 = vld [vmem:[%s0 + $0x28] sm:$0xff]
  %v17 = vld [vmem:[%s0 + $0x30] sm:$0xff]
  %v18 = vld [vmem:[%s0 + $0x38] sm:$0xff]
  %v19 = vld [vmem:[%s1] sm:$0x1]
  %v20 = vld [vmem:[%s1 + $0x1] sm:$0x1]
  %v21 = vld [vmem:[%s1 + $0x2] sm:$0x1]
  %v22 = vld [vmem:[%s1 + $0x3] sm:$0x3]
  %v23 = vld [vmem:[%s1 + $0x8] sm:$0xff]
  %v24 = vld [vmem:[%s1 + $0x10] sm:$0xff]
  %v25 = vld [vmem:[%s1 + $0x18] sm:$0xf]
  %v26 = vld [vmem:[%s1 + $0x20] sm:$0xff]
  %v27 = vld [vmem:[%s1 + $0x28] sm:$0xff]
  %v28 = vld [vmem:[%s1 + $0x30] sm:$0xf]
  %v29 = vlaneseq
  %v30 = vshrl.u32 %v29, 7
  %v31 = vsub.s32 0, %v30
  %v32 = vrot.slane %v19, %v31
  %vm33 = vcmask 15360
  %v35 = vsel %vm33, %v11, 0
  %v38 = vsel %vm33, %v12, 0
  %v41 = vsel %vm33, %v13, 0
  %v44 = vsel %vm33, %v14, 0
  %v47 = vsel %vm33, %v15, 0
  %v50 = vsel %vm33, %v16, 0
  %v53 = vsel %vm33, %v17, 0
  %v56 = vsel %vm33, %v18, 0
  %vm58 = vcmask 1041408
  %v60 = vsel %vm58, %v22, 0
  %62 = vmatprep.subr.mxu0 0.0
  %63 = vmatpush1.msra.mxu0 0.0
  %64 = vmatprep.subr.mxu0 0.0
  %65 = vmatpush1.msra.mxu0 0.0
  %66 = vmatprep.subr.mxu0 0.0
  %67 = vmatpush1.msra.mxu0 0.0
  %68 = vmatprep.subr.mxu0 0.0
  %69 = vmatpush1.msra.mxu0 0.0
  %70 = vmatprep.subr.mxu0 0.0
  %71 = vmatpush1.msra.mxu0 0.0
  %72 = vmatprep.subr.mxu0 0.0
  %73 = vmatpush1.msra.mxu0 0.0
  %74 = vmatprep.subr.mxu0 0.0
  %75 = vmatpush1.msra.mxu0 0.0
  %76 = vmatprep.subr.mxu0 0.0
  %77 = vmatpush1.msra.mxu0 0.0
  %78 = vmatprep.subr.mxu0 0.0
  %79 = vmatpush1.msra.mxu0 0.0
  %80 = vmatprep.subr.mxu0 0.0
  %81 = vmatpush1.msra.mxu0 0.0
  %82 = vmatprep.subr.mxu0 0.0
  %83 = vmatpush1.msra.mxu0 0.0
  %84 = vmatprep.subr.mxu0 0.0
  %85 = vmatpush1.msra.mxu0 0.0
  %86 = vmatprep.subr.mxu0 0.0
  %87 = vmatpush1.msra.mxu0 0.0
  %88 = vmatprep.subr.mxu0 0.0
  %89 = vmatpush1.msra.mxu0 0.0
  %90 = vmatprep.subr.mxu0 0.0
  %91 = vmatpush1.msra.mxu0 0.0
  %92 = vmatprep.subr.mxu0 0.0
  %93 = vmatpush1.msra.mxu0 %v60
  %94 = vmatprep.subr.mxu0 0.0
  %95 = vmatpush2.msra.mxu0 0.0
  %96 = vmatprep.subr.mxu0 0.0
  %97 = vmatpush2.msra.mxu0 0.0
  %98 = vmatprep.subr.mxu0 0.0
  %99 = vmatpush2.msra.mxu0 0.0
  %100 = vmatprep.subr.mxu0 0.0
  %101 = vmatpush2.msra.mxu0 0.0
  %102 = vmatprep.subr.mxu0 0.0
  %103 = vmatpush2.msra.mxu0 0.0
  %104 = vmatprep.subr.mxu0 0.0
  %105 = vmatpush2.msra.mxu0 0.0
  %106 = vmatprep.subr.mxu0 0.0
  %107 = vmatpush2.msra.mxu0 0.0
  %108 = vmatprep.subr.mxu0 0.0
  %109 = vmatpush2.msra.mxu0 0.0
  %110 = vmatprep.subr.mxu0 0.0
  %111 = vmatpush2.msra.mxu0 0.0
  %112 = vmatprep.subr.mxu0 0.0
  %113 = vmatpush2.msra.mxu0 0.0
  %114 = vmatprep.subr.mxu0 0.0
  %115 = vmatpush2.msra.mxu0 0.0
  %116 = vmatprep.subr.mxu0 0.0
  %117 = vmatpush2.msra.mxu0 0.0
  %118 = vmatprep.subr.mxu0 0.0
  %119 = vmatpush2.msra.mxu0 0.0
  %120 = vmatprep.subr.mxu0 0.0
  %121 = vmatpush2.msra.mxu0 0.0
  %122 = vmatprep.subr.mxu0 0.0
  %123 = vmatpush2.msra.mxu0 0.0
  %124 = vmatprep.subr.mxu0 0.0
  %125 = vmatpush2.msra.mxu0 0.0
  %126 = vmatprep.mubr.f32.mxu0 0.0
  %127 = vmatmul.mubr.f32.gmra.mxu0 %v35
  %v128 = vpop.f32.mrf.mxu0
  %v129 = vadd.f32 %v32, %v128
  %v130 = vpop.f32.mrf.mxu0
  %131 = vmatprep.mubr.f32.mxu0 0.0
  %132 = vmatmul.mubr.f32.gmra.mxu0 %v38
  %v133 = vpop.f32.mrf.mxu0
  %v134 = vadd.f32 %v32, %v133
  %v135 = vpop.f32.mrf.mxu0
  %136 = vmatprep.mubr.f32.mxu0 0.0
  %137 = vmatmul.mubr.f32.gmra.mxu0 %v41
  %v138 = vpop.f32.mrf.mxu0
  %v139 = vadd.f32 %v32, %v138
  %v140 = vpop.f32.mrf.mxu0
  %141 = vmatprep.mubr.f32.mxu0 0.0
  %142 = vmatmul.mubr.f32.gmra.mxu0 %v44
  %v143 = vpop.f32.mrf.mxu0
  %v144 = vadd.f32 %v32, %v143
  %v145 = vpop.f32.mrf.mxu0
  %146 = vmatprep.mubr.f32.mxu0 0.0
  %147 = vmatmul.mubr.f32.gmra.mxu0 %v47
  %v148 = vpop.f32.mrf.mxu0
  %v149 = vadd.f32 %v32, %v148
  %v150 = vpop.f32.mrf.mxu0
  %151 = vmatprep.mubr.f32.mxu0 0.0
  %152 = vmatmul.mubr.f32.gmra.mxu0 %v50
  %v153 = vpop.f32.mrf.mxu0
  %v154 = vadd.f32 %v32, %v153
  %v155 = vpop.f32.mrf.mxu0
  %156 = vmatprep.mubr.f32.mxu0 0.0
  %157 = vmatmul.mubr.f32.gmra.mxu0 %v53
  %v158 = vpop.f32.mrf.mxu0
  %v159 = vadd.f32 %v32, %v158
  %v160 = vpop.f32.mrf.mxu0
  %161 = vmatprep.mubr.f32.mxu0 0.0
  %162 = vmatmul.mubr.f32.gmra.mxu0 %v56
  %v163 = vpop.f32.mrf.mxu0
  %v164 = vadd.f32 %v32, %v163
  %v165 = vpop.f32.mrf.mxu0
  %166 = vdwg.mxu0
  %v167 = vtanh.pop %v129
  %v168 = vtanh.pop %v134
  %v169 = vtanh.pop %v139
  %v170 = vtanh.pop %v144
  %v171 = vtanh.pop %v149
  %v172 = vtanh.pop %v154
  %v173 = vtanh.pop %v159
  %v174 = vtanh.pop %v164
  %v175 = vlaneseq
  %v176 = vshrl.u32 %v175, 7
  %v177 = vsub.s32 0, %v176
  %v178 = vrot.slane %v20, %v177
  %vm179 = vcmask 162816
  %v181 = vsel %vm179, %v167, 0
  %v184 = vsel %vm179, %v168, 0
  %v187 = vsel %vm179, %v169, 0
  %v190 = vsel %vm179, %v170, 0
  %v193 = vsel %vm179, %v171, 0
  %v196 = vsel %vm179, %v172, 0
  %v199 = vsel %vm179, %v173, 0
  %v202 = vsel %vm179, %v174, 0
  %vm204 = vcmask 1043456
  %v206 = vsel %vm204, %v25, 0
  %208 = vmatprep.subr.mxu0 0.0
  %209 = vmatpush1.msra.mxu0 0.0
  %210 = vmatprep.subr.mxu0 0.0
  %211 = vmatpush1.msra.mxu0 0.0
  %212 = vmatprep.subr.mxu0 0.0
  %213 = vmatpush1.msra.mxu0 0.0
  %214 = vmatprep.subr.mxu0 0.0
  %215 = vmatpush1.msra.mxu0 0.0
  %216 = vmatprep.subr.mxu0 0.0
  %217 = vmatpush1.msra.mxu0 0.0
  %218 = vmatprep.subr.mxu0 0.0
  %219 = vmatpush1.msra.mxu0 0.0
  %220 = vmatprep.subr.mxu0 0.0
  %221 = vmatpush1.msra.mxu0 0.0
  %222 = vmatprep.subr.mxu0 0.0
  %223 = vmatpush1.msra.mxu0 0.0
  %224 = vmatprep.subr.mxu0 0.0
  %225 = vmatpush1.msra.mxu0 0.0
  %226 = vmatprep.subr.mxu0 0.0
  %227 = vmatpush1.msra.mxu0 0.0
  %228 = vmatprep.subr.mxu0 0.0
  %229 = vmatpush1.msra.mxu0 0.0
  %230 = vmatprep.subr.mxu0 0.0
  %231 = vmatpush1.msra.mxu0 0.0
  %232 = vmatprep.subr.mxu0 0.0
  %233 = vmatpush1.msra.mxu0 0.0
  %234 = vmatprep.subr.mxu0 0.0
  %235 = vmatpush1.msra.mxu0 %v206
  %236 = vmatprep.subr.mxu0 0.0
  %237 = vmatpush1.msra.mxu0 %v24
  %238 = vmatprep.subr.mxu0 0.0
  %239 = vmatpush1.msra.mxu0 %v23
  %240 = vmatprep.subr.mxu0 0.0
  %241 = vmatpush2.msra.mxu0 0.0
  %242 = vmatprep.subr.mxu0 0.0
  %243 = vmatpush2.msra.mxu0 0.0
  %244 = vmatprep.subr.mxu0 0.0
  %245 = vmatpush2.msra.mxu0 0.0
  %246 = vmatprep.subr.mxu0 0.0
  %247 = vmatpush2.msra.mxu0 0.0
  %248 = vmatprep.subr.mxu0 0.0
  %249 = vmatpush2.msra.mxu0 0.0
  %250 = vmatprep.subr.mxu0 0.0
  %251 = vmatpush2.msra.mxu0 0.0
  %252 = vmatprep.subr.mxu0 0.0
  %253 = vmatpush2.msra.mxu0 0.0
  %254 = vmatprep.subr.mxu0 0.0
  %255 = vmatpush2.msra.mxu0 0.0
  %256 = vmatprep.subr.mxu0 0.0
  %257 = vmatpush2.msra.mxu0 0.0
  %258 = vmatprep.subr.mxu0 0.0
  %259 = vmatpush2.msra.mxu0 0.0
  %260 = vmatprep.subr.mxu0 0.0
  %261 = vmatpush2.msra.mxu0 0.0
  %262 = vmatprep.subr.mxu0 0.0
  %263 = vmatpush2.msra.mxu0 0.0
  %264 = vmatprep.subr.mxu0 0.0
  %265 = vmatpush2.msra.mxu0 0.0
  %266 = vmatprep.subr.mxu0 0.0
  %267 = vmatpush2.msra.mxu0 0.0
  %268 = vmatprep.subr.mxu0 0.0
  %269 = vmatpush2.msra.mxu0 0.0
  %270 = vmatprep.subr.mxu0 0.0
  %271 = vmatpush2.msra.mxu0 0.0
  %272 = vmatprep.mubr.f32.mxu0 0.0
  %273 = vmatmul.mubr.f32.gmra.mxu0 %v181
  %v274 = vpop.f32.mrf.mxu0
  %v275 = vadd.f32 %v178, %v274
  %v276 = vpop.f32.mrf.mxu0
  %277 = vmatprep.mubr.f32.mxu0 0.0
  %278 = vmatmul.mubr.f32.gmra.mxu0 %v184
  %v279 = vpop.f32.mrf.mxu0
  %v280 = vadd.f32 %v178, %v279
  %v281 = vpop.f32.mrf.mxu0
  %282 = vmatprep.mubr.f32.mxu0 0.0
  %283 = vmatmul.mubr.f32.gmra.mxu0 %v187
  %v284 = vpop.f32.mrf.mxu0
  %v285 = vadd.f32 %v178, %v284
  %v286 = vpop.f32.mrf.mxu0
  %287 = vmatprep.mubr.f32.mxu0 0.0
  %288 = vmatmul.mubr.f32.gmra.mxu0 %v190
  %v289 = vpop.f32.mrf.mxu0
  %v290 = vadd.f32 %v178, %v289
  %v291 = vpop.f32.mrf.mxu0
  %292 = vmatprep.mubr.f32.mxu0 0.0
  %293 = vmatmul.mubr.f32.gmra.mxu0 %v193
  %v294 = vpop.f32.mrf.mxu0
  %v295 = vadd.f32 %v178, %v294
  %v296 = vpop.f32.mrf.mxu0
  %297 = vmatprep.mubr.f32.mxu0 0.0
  %298 = vmatmul.mubr.f32.gmra.mxu0 %v196
  %v299 = vpop.f32.mrf.mxu0
  %v300 = vadd.f32 %v178, %v299
  %v301 = vpop.f32.mrf.mxu0
  %302 = vmatprep.mubr.f32.mxu0 0.0
  %303 = vmatmul.mubr.f32.gmra.mxu0 %v199
  %v304 = vpop.f32.mrf.mxu0
  %v305 = vadd.f32 %v178, %v304
  %v306 = vpop.f32.mrf.mxu0
  %307 = vmatprep.mubr.f32.mxu0 0.0
  %308 = vmatmul.mubr.f32.gmra.mxu0 %v202
  %v309 = vpop.f32.mrf.mxu0
  %v310 = vadd.f32 %v178, %v309
  %v311 = vpop.f32.mrf.mxu0
  %312 = vdwg.mxu0
  %v313 = vtanh.pop %v275
  %v314 = vtanh.pop %v280
  %v315 = vtanh.pop %v285
  %v316 = vtanh.pop %v290
  %v317 = vtanh.pop %v295
  %v318 = vtanh.pop %v300
  %v319 = vtanh.pop %v305
  %v320 = vtanh.pop %v310
  %v322 = vsel %vm179, %v313, 0
  %v325 = vsel %vm179, %v314, 0
  %v328 = vsel %vm179, %v315, 0
  %v331 = vsel %vm179, %v316, 0
  %v334 = vsel %vm179, %v317, 0
  %v337 = vsel %vm179, %v318, 0
  %v340 = vsel %vm179, %v319, 0
  %v343 = vsel %vm179, %v320, 0
  %v346 = vsel %vm204, %v28, 0
  %348 = vmatprep.subr.mxu0 0.0
  %349 = vmatpush1.msra.mxu0 0.0
  %350 = vmatprep.subr.mxu0 0.0
  %351 = vmatpush1.msra.mxu0 0.0
  %352 = vmatprep.subr.mxu0 0.0
  %353 = vmatpush1.msra.mxu0 0.0
  %354 = vmatprep.subr.mxu0 0.0
  %355 = vmatpush1.msra.mxu0 0.0
  %356 = vmatprep.subr.mxu0 0.0
  %357 = vmatpush1.msra.mxu0 0.0
  %358 = vmatprep.subr.mxu0 0.0
  %359 = vmatpush1.msra.mxu0 0.0
  %360 = vmatprep.subr.mxu0 0.0
  %361 = vmatpush1.msra.mxu0 0.0
  %362 = vmatprep.subr.mxu0 0.0
  %363 = vmatpush1.msra.mxu0 0.0
  %364 = vmatprep.subr.mxu0 0.0
  %365 = vmatpush1.msra.mxu0 0.0
  %366 = vmatprep.subr.mxu0 0.0
  %367 = vmatpush1.msra.mxu0 0.0
  %368 = vmatprep.subr.mxu0 0.0
  %369 = vmatpush1.msra.mxu0 0.0
  %370 = vmatprep.subr.mxu0 0.0
  %371 = vmatpush1.msra.mxu0 0.0
  %372 = vmatprep.subr.mxu0 0.0
  %373 = vmatpush1.msra.mxu0 0.0
  %374 = vmatprep.subr.mxu0 0.0
  %375 = vmatpush1.msra.mxu0 %v346
  %376 = vmatprep.subr.mxu0 0.0
  %377 = vmatpush1.msra.mxu0 %v27
  %378 = vmatprep.subr.mxu0 0.0
  %379 = vmatpush1.msra.mxu0 %v26
  %380 = vmatprep.subr.mxu0 0.0
  %381 = vmatpush2.msra.mxu0 0.0
  %382 = vmatprep.subr.mxu0 0.0
  %383 = vmatpush2.msra.mxu0 0.0
  %384 = vmatprep.subr.mxu0 0.0
  %385 = vmatpush2.msra.mxu0 0.0
  %386 = vmatprep.subr.mxu0 0.0
  %387 = vmatpush2.msra.mxu0 0.0
  %388 = vmatprep.subr.mxu0 0.0
  %389 = vmatpush2.msra.mxu0 0.0
  %390 = vmatprep.subr.mxu0 0.0
  %391 = vmatpush2.msra.mxu0 0.0
  %392 = vmatprep.subr.mxu0 0.0
  %393 = vmatpush2.msra.mxu0 0.0
  %394 = vmatprep.subr.mxu0 0.0
  %395 = vmatpush2.msra.mxu0 0.0
  %396 = vmatprep.subr.mxu0 0.0
  %397 = vmatpush2.msra.mxu0 0.0
  %398 = vmatprep.subr.mxu0 0.0
  %399 = vmatpush2.msra.mxu0 0.0
  %400 = vmatprep.subr.mxu0 0.0
  %401 = vmatpush2.msra.mxu0 0.0
  %402 = vmatprep.subr.mxu0 0.0
  %403 = vmatpush2.msra.mxu0 0.0
  %404 = vmatprep.subr.mxu0 0.0
  %405 = vmatpush2.msra.mxu0 0.0
  %406 = vmatprep.subr.mxu0 0.0
  %407 = vmatpush2.msra.mxu0 0.0
  %408 = vmatprep.subr.mxu0 0.0
  %409 = vmatpush2.msra.mxu0 0.0
  %410 = vmatprep.subr.mxu0 0.0
  %411 = vmatpush2.msra.mxu0 0.0
  %412 = vmatprep.mubr.f32.mxu0 0.0
  %413 = vmatmul.mubr.f32.gmra.mxu0 %v322
  %v414 = vpop.f32.mrf.mxu0
  %v415 = vadd.f32 0.0, %v414
  %v416 = vpop.f32.mrf.mxu0
  %417 = vmatprep.mubr.f32.mxu0 0.0
  %418 = vmatmul.mubr.f32.gmra.mxu0 %v325
  %v419 = vpop.f32.mrf.mxu0
  %v420 = vadd.f32 0.0, %v419
  %v421 = vpop.f32.mrf.mxu0
  %422 = vmatprep.mubr.f32.mxu0 0.0
  %423 = vmatmul.mubr.f32.gmra.mxu0 %v328
  %v424 = vpop.f32.mrf.mxu0
  %v425 = vadd.f32 0.0, %v424
  %v426 = vpop.f32.mrf.mxu0
  %427 = vmatprep.mubr.f32.mxu0 0.0
  %428 = vmatmul.mubr.f32.gmra.mxu0 %v331
  %v429 = vpop.f32.mrf.mxu0
  %v430 = vadd.f32 0.0, %v429
  %v431 = vpop.f32.mrf.mxu0
  %432 = vmatprep.mubr.f32.mxu0 0.0
  %433 = vmatmul.mubr.f32.gmra.mxu0 %v334
  %v434 = vpop.f32.mrf.mxu0
  %v435 = vadd.f32 0.0, %v434
  %v436 = vpop.f32.mrf.mxu0
  %437 = vmatprep.mubr.f32.mxu0 0.0
  %438 = vmatmul.mubr.f32.gmra.mxu0 %v337
  %v439 = vpop.f32.mrf.mxu0
  %v440 = vadd.f32 0.0, %v439
  %v441 = vpop.f32.mrf.mxu0
  %442 = vmatprep.mubr.f32.mxu0 0.0
  %443 = vmatmul.mubr.f32.gmra.mxu0 %v340
  %v444 = vpop.f32.mrf.mxu0
  %v445 = vadd.f32 0.0, %v444
  %v446 = vpop.f32.mrf.mxu0
  %447 = vmatprep.mubr.f32.mxu0 0.0
  %448 = vmatmul.mubr.f32.gmra.mxu0 %v343
  %v449 = vpop.f32.mrf.mxu0
  %v450 = vadd.f32 0.0, %v449
  %v451 = vpop.f32.mrf.mxu0
  %452 = vdwg.mxu0
  %v453 = vrot.slane %v415, 7
  %v454 = vrot.slane %v420, 7
  %v455 = vrot.slane %v425, 7
  %v456 = vrot.slane %v430, 7
  %v457 = vrot.slane %v435, 7
  %v458 = vrot.slane %v440, 7
  %v459 = vrot.slane %v445, 7
  %v460 = vrot.slane %v450, 7
  %v461 = vlaneseq
  %v462 = vshrl.u32 %v461, 7
  %vm463 = vcmp.lt.s32.totalorder %v462, 1
  %v464 = vsel %vm463, %v459, %v460
  %v465 = vsel %vm463, %v458, %v459
  %v466 = vsel %vm463, %v457, %v458
  %v467 = vsel %vm463, %v456, %v457
  %v468 = vsel %vm463, %v455, %v456
  %v469 = vsel %vm463, %v454, %v455
  %v470 = vsel %vm463, %v453, %v454
  %v471 = vsel %vm463, %v460, %v453
  %v472 = vrot.slane %v415, 1
  %v473 = vrot.slane %v420, 1
  %v474 = vrot.slane %v425, 1
  %v475 = vrot.slane %v430, 1
  %v476 = vrot.slane %v435, 1
  %v477 = vrot.slane %v440, 1
  %v478 = vrot.slane %v445, 1
  %v479 = vrot.slane %v450, 1
  %vm480 = vcmp.lt.s32.totalorder %v462, 7
  %v481 = vsel %vm480, %v478, %v479
  %v482 = vsel %vm480, %v477, %v478
  %v483 = vsel %vm480, %v476, %v477
  %v484 = vsel %vm480, %v475, %v476
  %v485 = vsel %vm480, %v474, %v475
  %v486 = vsel %vm480, %v473, %v474
  %v487 = vsel %vm480, %v472, %v473
  %v488 = vsel %vm480, %v479, %v472
  %v489 = vadd.s32 %v462, 8
  %v490 = vadd.s32 %v462, 16
  %v491 = vadd.s32 %v462, 24
  %v492 = vadd.s32 %v462, 32
  %v493 = vadd.s32 %v462, 40
  %v494 = vadd.s32 %v462, 48
  %v495 = vadd.s32 %v462, 56
  %vm496 = vcmp.eq.s32.totalorder %v462, 0
  %vm497 = vcmp.eq.s32.totalorder %v489, 0
  %vm498 = vcmp.eq.s32.totalorder %v490, 0
  %vm499 = vcmp.eq.s32.totalorder %v491, 0
  %vm500 = vcmp.eq.s32.totalorder %v492, 0
  %vm501 = vcmp.eq.s32.totalorder %v493, 0
  %vm502 = vcmp.eq.s32.totalorder %v494, 0
  %vm503 = vcmp.eq.s32.totalorder %v495, 0
  %v504 = vsel %vm496, 0.0, %v471
  %v505 = vsel %vm497, 0.0, %v470
  %v506 = vsel %vm498, 0.0, %v469
  %v507 = vsel %vm499, 0.0, %v468
  %v508 = vsel %vm500, 0.0, %v467
  %v509 = vsel %vm501, 0.0, %v466
  %v510 = vsel %vm502, 0.0, %v465
  %v511 = vsel %vm503, 0.0, %v464
  %520 = vrot.lane.b32.xlu0 %v504, 1
  %v521 = vpop.permute.xlu0 %520
  %522 = vrot.lane.b32.xlu0 %v505, 1
  %v523 = vpop.permute.xlu0 %522
  %524 = vrot.lane.b32.xlu0 %v506, 1
  %v525 = vpop.permute.xlu0 %524
  %526 = vrot.lane.b32.xlu0 %v507, 1
  %v527 = vpop.permute.xlu0 %526
  %528 = vrot.lane.b32.xlu0 %v508, 1
  %v529 = vpop.permute.xlu0 %528
  %530 = vrot.lane.b32.xlu0 %v509, 1
  %v531 = vpop.permute.xlu0 %530
  %532 = vrot.lane.b32.xlu0 %v510, 1
  %v533 = vpop.permute.xlu0 %532
  %534 = vrot.lane.b32.xlu0 %v511, 1
  %v535 = vpop.permute.xlu0 %534
  %v544 = vadd.f32 %v415, %v521
  %v545 = vadd.f32 %v420, %v523
  %v546 = vadd.f32 %v425, %v525
  %v547 = vadd.f32 %v430, %v527
  %v548 = vadd.f32 %v435, %v529
  %v549 = vadd.f32 %v440, %v531
  %v550 = vadd.f32 %v445, %v533
  %v551 = vadd.f32 %v450, %v535
  %vm552 = vcmp.eq.s32.totalorder %v462, 63
  %vm553 = vcmp.eq.s32.totalorder %v489, 63
  %vm554 = vcmp.eq.s32.totalorder %v490, 63
  %vm555 = vcmp.eq.s32.totalorder %v491, 63
  %vm556 = vcmp.eq.s32.totalorder %v492, 63
  %vm557 = vcmp.eq.s32.totalorder %v493, 63
  %vm558 = vcmp.eq.s32.totalorder %v494, 63
  %vm559 = vcmp.eq.s32.totalorder %v495, 63
  %v560 = vsel %vm552, 0.0, %v487
  %v561 = vsel %vm553, 0.0, %v486
  %v562 = vsel %vm554, 0.0, %v485
  %v563 = vsel %vm555, 0.0, %v484
  %v564 = vsel %vm556, 0.0, %v483
  %v565 = vsel %vm557, 0.0, %v482
  %v566 = vsel %vm558, 0.0, %v481
  %v567 = vsel %vm559, 0.0, %v488
  %576 = vrot.lane.b32.xlu0 %v560, 127
  %v577 = vpop.permute.xlu0 %576
  %578 = vrot.lane.b32.xlu0 %v561, 127
  %v579 = vpop.permute.xlu0 %578
  %580 = vrot.lane.b32.xlu0 %v562, 127
  %v581 = vpop.permute.xlu0 %580
  %582 = vrot.lane.b32.xlu0 %v563, 127
  %v583 = vpop.permute.xlu0 %582
  %584 = vrot.lane.b32.xlu0 %v564, 127
  %v585 = vpop.permute.xlu0 %584
  %586 = vrot.lane.b32.xlu0 %v565, 127
  %v587 = vpop.permute.xlu0 %586
  %588 = vrot.lane.b32.xlu0 %v566, 127
  %v589 = vpop.permute.xlu0 %588
  %590 = vrot.lane.b32.xlu0 %v567, 127
  %v591 = vpop.permute.xlu0 %590
  %v600 = vadd.f32 %v544, %v577
  %v601 = vadd.f32 %v545, %v579
  %v602 = vadd.f32 %v546, %v581
  %v603 = vadd.f32 %v547, %v583
  %v604 = vadd.f32 %v548, %v585
  %v605 = vadd.f32 %v549, %v587
  %v606 = vadd.f32 %v550, %v589
  %v607 = vadd.f32 %v551, %v591
  %v608 = vlaneseq
  %v609 = vshrl.u32 %v608, 7
  %v610 = vsub.s32 0, %v609
  %v611 = vrot.slane %v21, %v610
  %613 = vrot.lane.b32.xlu0 %v611, 1
  %v614 = vpop.permute.xlu0 %613
  %v616 = vadd.f32 %v600, %v614
  %v617 = vadd.f32 %v601, %v614
  %v618 = vadd.f32 %v602, %v614
  %v619 = vadd.f32 %v603, %v614
  %v620 = vadd.f32 %v604, %v614
  %v621 = vadd.f32 %v605, %v614
  %v622 = vadd.f32 %v606, %v614
  %v623 = vadd.f32 %v607, %v614
  %632 = vrot.lane.b32.xlu0 %v616, 127
  %v633 = vpop.permute.xlu0 %632
  %634 = vrot.lane.b32.xlu0 %v617, 127
  %v635 = vpop.permute.xlu0 %634
  %636 = vrot.lane.b32.xlu0 %v618, 127
  %v637 = vpop.permute.xlu0 %636
  %638 = vrot.lane.b32.xlu0 %v619, 127
  %v639 = vpop.permute.xlu0 %638
  %640 = vrot.lane.b32.xlu0 %v620, 127
  %v641 = vpop.permute.xlu0 %640
  %642 = vrot.lane.b32.xlu0 %v621, 127
  %v643 = vpop.permute.xlu0 %642
  %644 = vrot.lane.b32.xlu0 %v622, 127
  %v645 = vpop.permute.xlu0 %644
  %646 = vrot.lane.b32.xlu0 %v623, 127
  %v647 = vpop.permute.xlu0 %646
  %vm656 = vcmask 7168
  %657 = vst.msk [vmem:[%s2] sm:$0xff] %vm656, %v633
  %658 = vst.msk [vmem:[%s2 + $0x8] sm:$0xff] %vm656, %v635
  %659 = vst.msk [vmem:[%s2 + $0x10] sm:$0xff] %vm656, %v637
  %660 = vst.msk [vmem:[%s2 + $0x18] sm:$0xff] %vm656, %v639
  %661 = vst.msk [vmem:[%s2 + $0x20] sm:$0xff] %vm656, %v641
  %662 = vst.msk [vmem:[%s2 + $0x28] sm:$0xff] %vm656, %v643
  %663 = vst.msk [vmem:[%s2 + $0x30] sm:$0xff] %vm656, %v645
  %664 = vst.msk [vmem:[%s2 + $0x38] sm:$0xff] %vm656, %v647
  // Predicated region
  $region10: #{tpu_custom_call.1} parent=0 // pred_check
    _
  $region11: #{tpu_custom_call.1} parent=0 // pred_check_branch
    %666 = sbr.rel (0) target = $region13
  $region12: #{tpu_custom_call.1} parent=0 // pred_region
    _
  $region13: #{tpu_custom_call.1} parent=0 // pred_fallthru
    _
  // Predicated region
  $region14: #{tpu_custom_call.1} parent=0 // pred_check
    _
  $region15: #{tpu_custom_call.1} parent=0 // pred_check_branch
    %668 = sbr.rel (0) target = $region17
  $region16: #{tpu_custom_call.1} parent=0 // pred_region
    _
  $region17: #{tpu_custom_call.1} parent=0 // pred_fallthru
    _

</llo_original>
